<compile_context>
chip_gen: v5e
topology: v5e:2x2
jax: 0.10.0
libtpu: 0.0.40
codegen_flags: <defaults>
</compile_context>

<pallas_src>
import functools

import jax
import jax.numpy as jnp
from jax import lax
from jax.experimental import pallas as pl
from jax.experimental.pallas import tpu as pltpu


def _round_up(x, m):
    return ((x + m - 1) // m) * m


# ---------------------------------------------------------------------------
# Kernel
# ---------------------------------------------------------------------------
def _make_branch_kernel(d_in, h, d_out, seg):
    """Build the kernel closure over static layer dims and slab segment stride."""

    def kernel(x_ref, slab_ref, o_ref):
        # x_ref:    (tile_b, d_in)          -- batch on sublanes (d_in tiny).
        # slab_ref: (max(h, d_out), 4*seg)  -- [W1|b1][W2|b2][W3|b3][W4|b4],
        #                                      each segment 128-lane aligned,
        #                                      scale already folded in.
        # o_ref:    (d_out, tile_b)         -- batch on lanes (full-width vst).
        x = x_ref[...]

        w1 = slab_ref[0:h, 0:d_in]
        b1 = slab_ref[0:h, d_in:d_in + 1]
        w2 = slab_ref[0:h, seg:seg + h]
        b2 = slab_ref[0:h, seg + h:seg + h + 1]
        w3 = slab_ref[0:h, 2 * seg:2 * seg + h]
        b3 = slab_ref[0:h, 2 * seg + h:2 * seg + h + 1]
        w4 = slab_ref[0:d_out, 3 * seg:3 * seg + h]
        b4 = slab_ref[0:d_out, 3 * seg + h:3 * seg + h + 1]

        # Layer 1: contract over d_in of both operands -> (h, tile_b).
        # (Equivalent to W1 @ x.T; the thin-tile transpose lands on the XLU.)
        h1 = jnp.tanh(
            lax.dot_general(w1, x, (((1,), (1,)), ((), ())),
                            preferred_element_type=jnp.float32) + b1)
        # Layers 2/3 (+ tanh) and 4 (no tanh), all (rows, tile_b).
        h2 = jnp.tanh(jnp.dot(w2, h1, preferred_element_type=jnp.float32) + b2)
        h3 = jnp.tanh(jnp.dot(w3, h2, preferred_element_type=jnp.float32) + b3)
        y = jnp.dot(w4, h3, preferred_element_type=jnp.float32) + b4

        o_ref[...] = y.astype(o_ref.dtype)

    return kernel


# ---------------------------------------------------------------------------
# Parameter prep: fold scale, pack everything into one slab
# ---------------------------------------------------------------------------
def prepare_branch_params(params, scale):
    """One-time transform: fold scale into W/b and pack into a single slab.

    params: PyTorch layout, W: (out_features, in_features), b: (out_features,).
    Returns a dict with the packed slab and the static layer dims.
    """
    s = jnp.float32(scale)
    h, d_in = params["w1"].shape
    d_out = params["w4"].shape[0]
    rows = max(h, d_out)
    seg = _round_up(max(d_in, h) + 1, 128)   # 128-lane-aligned segments

    slab = jnp.zeros((rows, 4 * seg), dtype=jnp.float32)

    def put(sl, k, w, b):
        w = (s * w).astype(jnp.float32)
        b = (s * b).astype(jnp.float32).reshape(-1, 1)
        wb = jnp.concatenate([w, b], axis=1)
        r, c = wb.shape
        return sl.at[0:r, k * seg:k * seg + c].set(wb)

    slab = put(slab, 0, params["w1"], params["b1"])
    slab = put(slab, 1, params["w2"], params["b2"])
    slab = put(slab, 2, params["w3"], params["b3"])
    slab = put(slab, 3, params["w4"], params["b4"])

    return {"slab": slab, "D_in": d_in, "H": h, "D_out": d_out, "seg": seg}


# ---------------------------------------------------------------------------
# Forward wrapper
# ---------------------------------------------------------------------------
@functools.partial(
    jax.jit,
    static_argnames=("d_in", "h", "d_out", "seg", "tile_b", "lane_major_output"))
def _branch_net_forward_impl(x, slab, *, d_in, h, d_out, seg, tile_b,
                             lane_major_output):
    B = x.shape[0]
    rows = slab.shape[0]
    grid = (pl.cdiv(B, tile_b),)

    kernel = _make_branch_kernel(d_in, h, d_out, seg)

    out_t = pl.pallas_call(
        kernel,
        out_shape=jax.ShapeDtypeStruct((d_out, B), jnp.float32),
        grid=grid,
        in_specs=[
            # x tile: batch on sublanes. Ragged last block is read-clipped by
            # Pallas; stale tail columns are column-separable and never stored.
            pl.BlockSpec((tile_b, d_in), lambda i: (i, 0)),
            # Packed weights/biases: one resident block, fetched once.
            pl.BlockSpec((rows, 4 * seg), lambda i: (0, 0)),
        ],
        # Output tile: batch on lanes (lane-dense, full-width stores).
        out_specs=pl.BlockSpec((d_out, tile_b), lambda i: (0, i)),
        compiler_params=pltpu.CompilerParams(
            dimension_semantics=("parallel",),
        ),
    )(x, slab)

    if lane_major_output:
        return out_t                      # (D_out, B) -- fuse .T into consumer
    return out_t.T                        # (B, D_out) -- PyTorch orientation


def branch_net_forward(x, prepped, *, tile_b=None, lane_major_output=False):
    """x: (B, D_in) float32.  prepped: output of prepare_branch_params."""
    B = x.shape[0]
    if tile_b is None:
        # Single grid step up to B=512 (latency-bound regime); cap at 512 for
        # f32 vreg pressure.  Keep tiles 128-lane aligned so all blocks obey
        # the (8,128) rule and only the ragged edges are clipped.
        tile_b = min(512, _round_up(B, 128))
    assert tile_b % 128 == 0, "tile_b must be a multiple of 128"
    return _branch_net_forward_impl(
        x, prepped["slab"],
        d_in=prepped["D_in"], h=prepped["H"], d_out=prepped["D_out"],
        seg=prepped["seg"], tile_b=tile_b, lane_major_output=lane_major_output)


# ---------------------------------------------------------------------------
# Init + pure-JAX reference (original unfolded math)
# ---------------------------------------------------------------------------
def init_branch_net_params(key, D_in, H, D_out):
    """Deterministic init matching the PyTorch module's normal_() init."""
    ks = jax.random.split(key, 8)

    def nrm(k, shape, std):
        return (std * jax.random.normal(k, shape)).astype(jnp.float32)

    return {
        "w1": nrm(ks[0], (H, D_in),  jnp.sqrt(2.0 / (D_in + H))),
        "b1": nrm(ks[1], (H,),       1.0),
        "w2": nrm(ks[2], (H, H),     jnp.sqrt(2.0 / (H + H))),
        "b2": nrm(ks[3], (H,),       1.0),
        "w3": nrm(ks[4], (H, H),     jnp.sqrt(2.0 / (H + H))),
        "b3": nrm(ks[5], (H,),       1.0),
        "w4": nrm(ks[6], (D_out, H), jnp.sqrt(2.0 / (H + D_out))),
        "b4": nrm(ks[7], (D_out,),   1.0),
    }


def branch_net_reference(x, params, scale):
    h1 = jnp.tanh(scale * (x @ params["w1"].T + params["b1"]))
    h2 = jnp.tanh(scale * (h1 @ params["w2"].T + params["b2"]))
    h3 = jnp.tanh(scale * (h2 @ params["w3"].T + params["b3"]))
    return scale * (h3 @ params["w4"].T + params["b4"])


# ---------------------------------------------------------------------------
# Demo / self-check
# ---------------------------------------------------------------------------
if __name__ == "__main__":
    # Branch net input: (a, b, Mt, G) -> D_in = 4.
    D_in, H, D_out = 4, 32, 16

    key = jax.random.PRNGKey(0)
    kp, kx = jax.random.split(key)
    params = init_branch_net_params(kp, D_in, H, D_out)

    # a1 = 0.1, n = 1 / 0.1 -> scale = n * a1 = 1.0 (kept explicit for fidelity)
    a1 = 0.1
    n = 1.0 / a1
    scale = n * a1

    prepped = prepare_branch_params(params, scale)

    # Two batch sizes: 256 (single grid step, lane-aligned) and 700
    # (multi-step grid with a ragged, clip-handled last block).
    for B in (256, 700):
        x = jax.random.normal(jax.random.fold_in(kx, B), (B, D_in),
                              dtype=jnp.float32)
        y = branch_net_forward(x, prepped)
        y = jax.block_until_ready(y)
        y_ref = branch_net_reference(x, params, scale)
        assert y.shape == (B, D_out)
        assert jnp.allclose(y, y_ref, atol=1e-4, rtol=1e-4), f"mismatch at B={B}"

    print("KERNEL_OK")
</pallas_src>

<mosaic_0001>
module attributes {stable_mosaic.version = 11 : i64} {
  func.func @kernel(%arg0: i32, %arg1: memref<256x4xf32, #tpu.memory_space<vmem>>, %arg2: memref<32x512xf32, #tpu.memory_space<vmem>>, %arg3: memref<16x256xf32, #tpu.memory_space<vmem>>) attributes {dimension_semantics = [#tpu.dimension_semantics<parallel>], iteration_bounds = array<i64: 1>, scalar_prefetch = 0 : i64, scratch_operands = 0 : i64, tpu.core_type = #tpu.core_type<tc>, window_params = [{transform_indices = @transform_0, window_bounds = array<i64: 256, 4>}, {pipeline_mode = #tpu.pipeline_mode<synchronous>, transform_indices = @transform_1, window_bounds = array<i64: 32, 512>}, {transform_indices = @transform_2, window_bounds = array<i64: 16, 256>}]} {
    %c0 = arith.constant 0 : index
    %c0_0 = arith.constant 0 : index
    %0 = vector.load %arg1[%c0, %c0_0] : memref<256x4xf32, #tpu.memory_space<vmem>>, vector<256x4xf32>
    %c0_1 = arith.constant 0 : index
    %c0_2 = arith.constant 0 : index
    %1 = vector.load %arg2[%c0_1, %c0_2] : memref<32x512xf32, #tpu.memory_space<vmem>>, vector<32x4xf32>
    %c0_3 = arith.constant 0 : index
    %c4 = arith.constant 4 : index
    %2 = vector.load %arg2[%c0_3, %c4] : memref<32x512xf32, #tpu.memory_space<vmem>>, vector<32x1xf32>
    %c0_4 = arith.constant 0 : index
    %c128 = arith.constant 128 : index
    %3 = vector.load %arg2[%c0_4, %c128] : memref<32x512xf32, #tpu.memory_space<vmem>>, vector<32x32xf32>
    %c0_5 = arith.constant 0 : index
    %c160 = arith.constant 160 : index
    %4 = vector.load %arg2[%c0_5, %c160] : memref<32x512xf32, #tpu.memory_space<vmem>>, vector<32x1xf32>
    %c0_6 = arith.constant 0 : index
    %c256 = arith.constant 256 : index
    %5 = vector.load %arg2[%c0_6, %c256] : memref<32x512xf32, #tpu.memory_space<vmem>>, vector<32x32xf32>
    %c0_7 = arith.constant 0 : index
    %c288 = arith.constant 288 : index
    %6 = vector.load %arg2[%c0_7, %c288] : memref<32x512xf32, #tpu.memory_space<vmem>>, vector<32x1xf32>
    %c0_8 = arith.constant 0 : index
    %c384 = arith.constant 384 : index
    %7 = vector.load %arg2[%c0_8, %c384] : memref<32x512xf32, #tpu.memory_space<vmem>>, vector<16x32xf32>
    %c0_9 = arith.constant 0 : index
    %c416 = arith.constant 416 : index
    %8 = vector.load %arg2[%c0_9, %c416] : memref<32x512xf32, #tpu.memory_space<vmem>>, vector<16x1xf32>
    %cst = arith.constant dense<0.000000e+00> : vector<32x256xf32>
    %9 = tpu.matmul %1, %0, %cst {dimension_numbers = #tpu.dot_dimension_numbers<[1], [1], [0], [0], [0, 0, 1, 0], [], []>} : vector<32x4xf32>, vector<256x4xf32>, vector<32x256xf32> -> vector<32x256xf32>
    %10 = vector.broadcast %2 : vector<32x1xf32> to vector<32x256xf32>
    %11 = arith.addf %9, %10 : vector<32x256xf32>
    %12 = math.tanh %11 : vector<32x256xf32>
    %cst_10 = arith.constant dense<0.000000e+00> : vector<32x256xf32>
    %13 = tpu.matmul %3, %12, %cst_10 {dimension_numbers = #tpu.dot_dimension_numbers<[1], [0], [0], [1], [0, 0, 1, 1], [], []>} : vector<32x32xf32>, vector<32x256xf32>, vector<32x256xf32> -> vector<32x256xf32>
    %14 = vector.broadcast %4 : vector<32x1xf32> to vector<32x256xf32>
    %15 = arith.addf %13, %14 : vector<32x256xf32>
    %16 = math.tanh %15 : vector<32x256xf32>
    %cst_11 = arith.constant dense<0.000000e+00> : vector<32x256xf32>
    %17 = tpu.matmul %5, %16, %cst_11 {dimension_numbers = #tpu.dot_dimension_numbers<[1], [0], [0], [1], [0, 0, 1, 1], [], []>} : vector<32x32xf32>, vector<32x256xf32>, vector<32x256xf32> -> vector<32x256xf32>
    %18 = vector.broadcast %6 : vector<32x1xf32> to vector<32x256xf32>
    %19 = arith.addf %17, %18 : vector<32x256xf32>
    %20 = math.tanh %19 : vector<32x256xf32>
    %cst_12 = arith.constant dense<0.000000e+00> : vector<16x256xf32>
    %21 = tpu.matmul %7, %20, %cst_12 {dimension_numbers = #tpu.dot_dimension_numbers<[1], [0], [0], [1], [0, 0, 1, 1], [], []>} : vector<16x32xf32>, vector<32x256xf32>, vector<16x256xf32> -> vector<16x256xf32>
    %22 = vector.broadcast %8 : vector<16x1xf32> to vector<16x256xf32>
    %23 = arith.addf %21, %22 : vector<16x256xf32>
    %c0_13 = arith.constant 0 : index
    %c0_14 = arith.constant 0 : index
    %24 = vector.load %arg3[%c0_13, %c0_14] : memref<16x256xf32, #tpu.memory_space<vmem>>, vector<16x256xf32>
    tpu.vector_store %arg3[%c0_13, %c0_14], %23 {strides = array<i32>} : memref<16x256xf32, #tpu.memory_space<vmem>>, vector<16x256xf32>,
    return
  }
  func.func @transform_0(%arg0: i32) -> (i32, i32) {
    %c0_i32 = arith.constant 0 : i32
    %c0_i32_0 = arith.constant 0 : i32
    return %arg0, %c0_i32 : i32, i32
  }
  func.func @transform_1(%arg0: i32) -> (i32, i32) {
    %c0_i32 = arith.constant 0 : i32
    %c0_i32_0 = arith.constant 0 : i32
    %c0_i32_1 = arith.constant 0 : i32
    return %c0_i32, %c0_i32_0 : i32, i32
  }
  func.func @transform_2(%arg0: i32) -> (i32, i32) {
    %c0_i32 = arith.constant 0 : i32
    %c0_i32_0 = arith.constant 0 : i32
    return %c0_i32, %arg0 : i32, i32
  }
}

</mosaic_0001>

<llo_original>
// kernel: _branch_net_forward_impl.1
$region0: #{_branch_net_forward_impl.1}
  #allocation0 [shape = 'u32[]', space=smem, size = 0x4, offset = 0x4, fixed_abs, tag = 'smem constant byte address 0x4 - core index']
  #allocation1 [shape = 'u32[72,128]{1,0:T(1,128)}', space=vmem, size = 0x9000, scoped, tag = 'internal scratch']
  %s0 = inlined_call_operand.vmem [shape: f32[256,4], index: 0, kind: input, shape index: {}]
  %s1 = inlined_call_operand.vmem [shape: f32[32,512], index: 1, kind: input, shape index: {}]
  %s2 = inlined_call_operand.hbm [shape: f32[16,256], index: 2, kind: output, shape index: {}]
  %s3 = sld [smem:[#allocation0]]
  $region18: #{_branch_net_forward_impl.1} parent=0
    _
  %s5 = ssub.s32 1, %s3
  %s6 = scalar_select 0, %s5, %s3
  $region1: #{_branch_net_forward_impl.1} parent=0
    #allocation2 [shape = 'u8[16384]{0}', space=vmem, size = 0x4000, scoped, tag = 'output window, operand 0, single buffered']
    #allocation3 [shape = 's32[1]{0}', space=sflag, size = 0x4, scoped, tag = 'scoped memory for _branch_net_forward_impl.1']
    %7 = vsyncpa [#allocation3], 0
    // Predicated region
    $region2: #{_branch_net_forward_impl.1} parent=1 // pred_check
      _
    $region3: #{_branch_net_forward_impl.1} parent=1 // pred_check_branch
      %9 = sbr.rel (0) target = $region5
    $region4: #{_branch_net_forward_impl.1} parent=1 // pred_region
      _
    $region5: #{_branch_net_forward_impl.1} parent=1 // pred_fallthru
      _
    // Predicated region
    $region6: #{_branch_net_forward_impl.1} parent=1 // pred_check
      _
    $region7: #{_branch_net_forward_impl.1} parent=1 // pred_check_branch
      %11 = sbr.rel (0) target = $region9
    $region8: #{_branch_net_forward_impl.1} parent=1 // pred_region
      _
    $region9: #{_branch_net_forward_impl.1} parent=1 // pred_fallthru
      _
    %v12 = vld [vmem:[%s0] sm:$0xff]
    %v13 = vld [vmem:[%s0 + $0x8] sm:$0xff]
    %v14 = vld [vmem:[%s0 + $0x10] sm:$0xff]
    %v15 = vld [vmem:[%s0 + $0x18] sm:$0xff]
    %v16 = vld [vmem:[%s0 + $0x20] sm:$0xff]
    %v17 = vld [vmem:[%s0 + $0x28] sm:$0xff]
    %v18 = vld [vmem:[%s0 + $0x30] sm:$0xff]
    %v19 = vld [vmem:[%s0 + $0x38] sm:$0xff]
    %v20 = vld [vmem:[%s0 + $0x40] sm:$0xff]
    %v21 = vld [vmem:[%s0 + $0x48] sm:$0xff]
    %v22 = vld [vmem:[%s0 + $0x50] sm:$0xff]
    %v23 = vld [vmem:[%s0 + $0x58] sm:$0xff]
    %v24 = vld [vmem:[%s0 + $0x60] sm:$0xff]
    %v25 = vld [vmem:[%s0 + $0x68] sm:$0xff]
    %v26 = vld [vmem:[%s0 + $0x70] sm:$0xff]
    %v27 = vld [vmem:[%s0 + $0x78] sm:$0xff]
    %v28 = vld [vmem:[%s0 + $0x80] sm:$0xff]
    %v29 = vld [vmem:[%s0 + $0x88] sm:$0xff]
    %v30 = vld [vmem:[%s0 + $0x90] sm:$0xff]
    %v31 = vld [vmem:[%s0 + $0x98] sm:$0xff]
    %v32 = vld [vmem:[%s0 + $0xa0] sm:$0xff]
    %v33 = vld [vmem:[%s0 + $0xa8] sm:$0xff]
    %v34 = vld [vmem:[%s0 + $0xb0] sm:$0xff]
    %v35 = vld [vmem:[%s0 + $0xb8] sm:$0xff]
    %v36 = vld [vmem:[%s0 + $0xc0] sm:$0xff]
    %v37 = vld [vmem:[%s0 + $0xc8] sm:$0xff]
    %v38 = vld [vmem:[%s0 + $0xd0] sm:$0xff]
    %v39 = vld [vmem:[%s0 + $0xd8] sm:$0xff]
    %v40 = vld [vmem:[%s0 + $0xe0] sm:$0xff]
    %v41 = vld [vmem:[%s0 + $0xe8] sm:$0xff]
    %v42 = vld [vmem:[%s0 + $0xf0] sm:$0xff]
    %v43 = vld [vmem:[%s0 + $0xf8] sm:$0xff]
    %v44 = vld [vmem:[%s1] sm:$0xff]
    %v45 = vld [vmem:[%s1 + $0x20] sm:$0xff]
    %v46 = vld [vmem:[%s1 + $0x40] sm:$0xff]
    %v47 = vld [vmem:[%s1 + $0x60] sm:$0xff]
    %v48 = vld [vmem:[%s1 + $0x8] sm:$0xff]
    %v49 = vld [vmem:[%s1 + $0x28] sm:$0xff]
    %v50 = vld [vmem:[%s1 + $0x48] sm:$0xff]
    %v51 = vld [vmem:[%s1 + $0x68] sm:$0xff]
    %v52 = vld [vmem:[%s1 + $0x10] sm:$0xff]
    %v53 = vld [vmem:[%s1 + $0x30] sm:$0xff]
    %v54 = vld [vmem:[%s1 + $0x50] sm:$0xff]
    %v55 = vld [vmem:[%s1 + $0x70] sm:$0xff]
    %v56 = vld [vmem:[%s1 + $0x18] sm:$0xff]
    %v57 = vld [vmem:[%s1 + $0x38] sm:$0xff]
    %59 = vset.pattern.permute.xlu0 4
    %60 = vperm.xlu0 %59, %v44
    %v61 = vpop.permute.xlu0 %60
    %64 = vset.pattern.permute.xlu0 4
    %65 = vperm.xlu0 %64, %v45
    %v66 = vpop.permute.xlu0 %65
    %69 = vset.pattern.permute.xlu0 4
    %70 = vperm.xlu0 %69, %v46
    %v71 = vpop.permute.xlu0 %70
    %74 = vset.pattern.permute.xlu0 4
    %75 = vperm.xlu0 %74, %v47
    %v76 = vpop.permute.xlu0 %75
    %vm78 = vcmask 31744
    %v79 = vsel %vm78, %v44, 0
    %v81 = vsel %vm78, %v45, 0
    %v83 = vsel %vm78, %v46, 0
    %v85 = vsel %vm78, %v47, 0
    %v88 = vsel %vm78, %v12, 0
    %v91 = vsel %vm78, %v13, 0
    %v94 = vsel %vm78, %v14, 0
    %v97 = vsel %vm78, %v15, 0
    %v100 = vsel %vm78, %v16, 0
    %v103 = vsel %vm78, %v17, 0
    %v106 = vsel %vm78, %v18, 0
    %v109 = vsel %vm78, %v19, 0
    %v112 = vsel %vm78, %v20, 0
    %v115 = vsel %vm78, %v21, 0
    %v118 = vsel %vm78, %v22, 0
    %v121 = vsel %vm78, %v23, 0
    %v124 = vsel %vm78, %v24, 0
    %v127 = vsel %vm78, %v25, 0
    %v130 = vsel %vm78, %v26, 0
    %v133 = vsel %vm78, %v27, 0
    %v136 = vsel %vm78, %v28, 0
    %v139 = vsel %vm78, %v29, 0
    %v142 = vsel %vm78, %v30, 0
    %v145 = vsel %vm78, %v31, 0
    %v148 = vsel %vm78, %v32, 0
    %v151 = vsel %vm78, %v33, 0
    %v154 = vsel %vm78, %v34, 0
    %v157 = vsel %vm78, %v35, 0
    %v160 = vsel %vm78, %v36, 0
    %v163 = vsel %vm78, %v37, 0
    %v166 = vsel %vm78, %v38, 0
    %v169 = vsel %vm78, %v39, 0
    %v172 = vsel %vm78, %v40, 0
    %v175 = vsel %vm78, %v41, 0
    %v178 = vsel %vm78, %v42, 0
    %v181 = vsel %vm78, %v43, 0
    %183 = vmatpush.xpose.msra.mxu0 %v133
    %184 = vmatpush.xpose.msra.mxu0 %v130
    %185 = vmatpush.xpose.msra.mxu0 %v127
    %186 = vmatpush.xpose.msra.mxu0 %v124
    %187 = vmatpush.xpose.msra.mxu0 %v121
    %188 = vmatpush.xpose.msra.mxu0 %v118
    %189 = vmatpush.xpose.msra.mxu0 %v115
    %190 = vmatpush.xpose.msra.mxu0 %v112
    %191 = vmatpush.xpose.msra.mxu0 %v109
    %192 = vmatpush.xpose.msra.mxu0 %v106
    %193 = vmatpush.xpose.msra.mxu0 %v103
    %194 = vmatpush.xpose.msra.mxu0 %v100
    %195 = vmatpush.xpose.msra.mxu0 %v97
    %196 = vmatpush.xpose.msra.mxu0 %v94
    %197 = vmatpush.xpose.msra.mxu0 %v91
    %198 = vmatpush.xpose.msra.mxu0 %v88
    %199 = vmatmul.f32.gmra.mxu0 %v79
    %v200 = vpop.f32.mrf.mxu0
    %v201 = vadd.f32 %v61, %v200
    %202 = vmatmul.f32.gmra.mxu0 %v81
    %v203 = vpop.f32.mrf.mxu0
    %v204 = vadd.f32 %v66, %v203
    %205 = vmatmul.f32.gmra.mxu0 %v83
    %v206 = vpop.f32.mrf.mxu0
    %v207 = vadd.f32 %v71, %v206
    %208 = vmatmul.f32.gmra.mxu0 %v85
    %v209 = vpop.f32.mrf.mxu0
    %v210 = vadd.f32 %v76, %v209
    %211 = vdwg.mxu0
    %212 = vmatpush.xpose.msra.mxu0 %v181
    %213 = vmatpush.xpose.msra.mxu0 %v178
    %214 = vmatpush.xpose.msra.mxu0 %v175
    %215 = vmatpush.xpose.msra.mxu0 %v172
    %216 = vmatpush.xpose.msra.mxu0 %v169
    %217 = vmatpush.xpose.msra.mxu0 %v166
    %218 = vmatpush.xpose.msra.mxu0 %v163
    %219 = vmatpush.xpose.msra.mxu0 %v160
    %220 = vmatpush.xpose.msra.mxu0 %v157
    %221 = vmatpush.xpose.msra.mxu0 %v154
    %222 = vmatpush.xpose.msra.mxu0 %v151
    %223 = vmatpush.xpose.msra.mxu0 %v148
    %224 = vmatpush.xpose.msra.mxu0 %v145
    %225 = vmatpush.xpose.msra.mxu0 %v142
    %226 = vmatpush.xpose.msra.mxu0 %v139
    %227 = vmatpush.xpose.msra.mxu0 %v136
    %228 = vmatmul.f32.gmra.mxu0 %v79
    %v229 = vpop.f32.mrf.mxu0
    %v230 = vadd.f32 %v61, %v229
    %231 = vmatmul.f32.gmra.mxu0 %v81
    %v232 = vpop.f32.mrf.mxu0
    %v233 = vadd.f32 %v66, %v232
    %234 = vmatmul.f32.gmra.mxu0 %v83
    %v235 = vpop.f32.mrf.mxu0
    %v236 = vadd.f32 %v71, %v235
    %237 = vmatmul.f32.gmra.mxu0 %v85
    %v238 = vpop.f32.mrf.mxu0
    %v239 = vadd.f32 %v76, %v238
    %240 = vdwg.mxu0
    %v241 = vtanh.pop %v201
    %v242 = vtanh.pop %v230
    %v243 = vtanh.pop %v204
    %v244 = vtanh.pop %v233
    %v245 = vtanh.pop %v207
    %v246 = vtanh.pop %v236
    %v247 = vtanh.pop %v210
    %v248 = vtanh.pop %v239
    %250 = vset.pattern.permute.xlu0 32
    %251 = vperm.xlu0 %250, %v48
    %v252 = vpop.permute.xlu0 %251
    %255 = vset.pattern.permute.xlu0 32
    %256 = vperm.xlu0 %255, %v49
    %v257 = vpop.permute.xlu0 %256
    %260 = vset.pattern.permute.xlu0 32
    %261 = vperm.xlu0 %260, %v50
    %v262 = vpop.permute.xlu0 %261
    %265 = vset.pattern.permute.xlu0 32
    %266 = vperm.xlu0 %265, %v51
    %v267 = vpop.permute.xlu0 %266
    %vm269 = vcmask 261120
    %v270 = vsel %vm269, %v48, 0
    %v272 = vsel %vm269, %v49, 0
    %v274 = vsel %vm269, %v50, 0
    %v276 = vsel %vm269, %v51, 0
    %278 = vmatpush.msra.mxu0 0.0
    %279 = vmatpush.msra.mxu0 0.0
    %280 = vmatpush.msra.mxu0 0.0
    %281 = vmatpush.msra.mxu0 0.0
    %282 = vmatpush.msra.mxu0 0.0
    %283 = vmatpush.msra.mxu0 0.0
    %284 = vmatpush.msra.mxu0 0.0
    %285 = vmatpush.msra.mxu0 0.0
    %286 = vmatpush.msra.mxu0 0.0
    %287 = vmatpush.msra.mxu0 0.0
    %288 = vmatpush.msra.mxu0 0.0
    %289 = vmatpush.msra.mxu0 0.0
    %290 = vmatpush.msra.mxu0 %v247
    %291 = vmatpush.msra.mxu0 %v245
    %292 = vmatpush.msra.mxu0 %v243
    %293 = vmatpush.msra.mxu0 %v241
    %294 = vmatmul.f32.gmra.mxu0 %v270
    %v295 = vpop.f32.mrf.mxu0
    %v296 = vadd.f32 %v252, %v295
    %297 = vmatmul.f32.gmra.mxu0 %v272
    %v298 = vpop.f32.mrf.mxu0
    %v299 = vadd.f32 %v257, %v298
    %300 = vmatmul.f32.gmra.mxu0 %v274
    %v301 = vpop.f32.mrf.mxu0
    %v302 = vadd.f32 %v262, %v301
    %303 = vmatmul.f32.gmra.mxu0 %v276
    %v304 = vpop.f32.mrf.mxu0
    %v305 = vadd.f32 %v267, %v304
    %306 = vdwg.mxu0
    %307 = vmatpush.msra.mxu0 0.0
    %308 = vmatpush.msra.mxu0 0.0
    %309 = vmatpush.msra.mxu0 0.0
    %310 = vmatpush.msra.mxu0 0.0
    %311 = vmatpush.msra.mxu0 0.0
    %312 = vmatpush.msra.mxu0 0.0
    %313 = vmatpush.msra.mxu0 0.0
    %314 = vmatpush.msra.mxu0 0.0
    %315 = vmatpush.msra.mxu0 0.0
    %316 = vmatpush.msra.mxu0 0.0
    %317 = vmatpush.msra.mxu0 0.0
    %318 = vmatpush.msra.mxu0 0.0
    %319 = vmatpush.msra.mxu0 %v248
    %320 = vmatpush.msra.mxu0 %v246
    %321 = vmatpush.msra.mxu0 %v244
    %322 = vmatpush.msra.mxu0 %v242
    %323 = vmatmul.f32.gmra.mxu0 %v270
    %v324 = vpop.f32.mrf.mxu0
    %v325 = vadd.f32 %v252, %v324
    %326 = vmatmul.f32.gmra.mxu0 %v272
    %v327 = vpop.f32.mrf.mxu0
    %v328 = vadd.f32 %v257, %v327
    %329 = vmatmul.f32.gmra.mxu0 %v274
    %v330 = vpop.f32.mrf.mxu0
    %v331 = vadd.f32 %v262, %v330
    %332 = vmatmul.f32.gmra.mxu0 %v276
    %v333 = vpop.f32.mrf.mxu0
    %v334 = vadd.f32 %v267, %v333
    %335 = vdwg.mxu0
    %v336 = vtanh.pop %v296
    %v337 = vtanh.pop %v325
    %v338 = vtanh.pop %v299
    %v339 = vtanh.pop %v328
    %v340 = vtanh.pop %v302
    %v341 = vtanh.pop %v331
    %v342 = vtanh.pop %v305
    %v343 = vtanh.pop %v334
    %345 = vset.pattern.permute.xlu0 32
    %346 = vperm.xlu0 %345, %v52
    %v347 = vpop.permute.xlu0 %346
    %350 = vset.pattern.permute.xlu0 32
    %351 = vperm.xlu0 %350, %v53
    %v352 = vpop.permute.xlu0 %351
    %355 = vset.pattern.permute.xlu0 32
    %356 = vperm.xlu0 %355, %v54
    %v357 = vpop.permute.xlu0 %356
    %360 = vset.pattern.permute.xlu0 32
    %361 = vperm.xlu0 %360, %v55
    %v362 = vpop.permute.xlu0 %361
    %v364 = vsel %vm269, %v52, 0
    %v366 = vsel %vm269, %v53, 0
    %v368 = vsel %vm269, %v54, 0
    %v370 = vsel %vm269, %v55, 0
    %372 = vmatpush.msra.mxu0 0.0
    %373 = vmatpush.msra.mxu0 0.0
    %374 = vmatpush.msra.mxu0 0.0
    %375 = vmatpush.msra.mxu0 0.0
    %376 = vmatpush.msra.mxu0 0.0
    %377 = vmatpush.msra.mxu0 0.0
    %378 = vmatpush.msra.mxu0 0.0
    %379 = vmatpush.msra.mxu0 0.0
    %380 = vmatpush.msra.mxu0 0.0
    %381 = vmatpush.msra.mxu0 0.0
    %382 = vmatpush.msra.mxu0 0.0
    %383 = vmatpush.msra.mxu0 0.0
    %384 = vmatpush.msra.mxu0 %v342
    %385 = vmatpush.msra.mxu0 %v340
    %386 = vmatpush.msra.mxu0 %v338
    %387 = vmatpush.msra.mxu0 %v336
    %388 = vmatmul.f32.gmra.mxu0 %v364
    %v389 = vpop.f32.mrf.mxu0
    %v390 = vadd.f32 %v347, %v389
    %391 = vmatmul.f32.gmra.mxu0 %v366
    %v392 = vpop.f32.mrf.mxu0
    %v393 = vadd.f32 %v352, %v392
    %394 = vmatmul.f32.gmra.mxu0 %v368
    %v395 = vpop.f32.mrf.mxu0
    %v396 = vadd.f32 %v357, %v395
    %397 = vmatmul.f32.gmra.mxu0 %v370
    %v398 = vpop.f32.mrf.mxu0
    %v399 = vadd.f32 %v362, %v398
    %400 = vdwg.mxu0
    %401 = vmatpush.msra.mxu0 0.0
    %402 = vmatpush.msra.mxu0 0.0
    %403 = vmatpush.msra.mxu0 0.0
    %404 = vmatpush.msra.mxu0 0.0
    %405 = vmatpush.msra.mxu0 0.0
    %406 = vmatpush.msra.mxu0 0.0
    %407 = vmatpush.msra.mxu0 0.0
    %408 = vmatpush.msra.mxu0 0.0
    %409 = vmatpush.msra.mxu0 0.0
    %410 = vmatpush.msra.mxu0 0.0
    %411 = vmatpush.msra.mxu0 0.0
    %412 = vmatpush.msra.mxu0 0.0
    %413 = vmatpush.msra.mxu0 %v343
    %414 = vmatpush.msra.mxu0 %v341
    %415 = vmatpush.msra.mxu0 %v339
    %416 = vmatpush.msra.mxu0 %v337
    %417 = vmatmul.f32.gmra.mxu0 %v364
    %v418 = vpop.f32.mrf.mxu0
    %v419 = vadd.f32 %v347, %v418
    %420 = vmatmul.f32.gmra.mxu0 %v366
    %v421 = vpop.f32.mrf.mxu0
    %v422 = vadd.f32 %v352, %v421
    %423 = vmatmul.f32.gmra.mxu0 %v368
    %v424 = vpop.f32.mrf.mxu0
    %v425 = vadd.f32 %v357, %v424
    %426 = vmatmul.f32.gmra.mxu0 %v370
    %v427 = vpop.f32.mrf.mxu0
    %v428 = vadd.f32 %v362, %v427
    %429 = vdwg.mxu0
    %v430 = vtanh.pop %v390
    %v431 = vtanh.pop %v419
    %v432 = vtanh.pop %v393
    %v433 = vtanh.pop %v422
    %v434 = vtanh.pop %v396
    %v435 = vtanh.pop %v425
    %v436 = vtanh.pop %v399
    %v437 = vtanh.pop %v428
    %439 = vset.pattern.permute.xlu0 32
    %440 = vperm.xlu0 %439, %v56
    %v441 = vpop.permute.xlu0 %440
    %444 = vset.pattern.permute.xlu0 32
    %445 = vperm.xlu0 %444, %v57
    %v446 = vpop.permute.xlu0 %445
    %v448 = vsel %vm269, %v56, 0
    %v450 = vsel %vm269, %v57, 0
    %452 = vmatpush.msra.mxu0 0.0
    %453 = vmatpush.msra.mxu0 0.0
    %454 = vmatpush.msra.mxu0 0.0
    %455 = vmatpush.msra.mxu0 0.0
    %456 = vmatpush.msra.mxu0 0.0
    %457 = vmatpush.msra.mxu0 0.0
    %458 = vmatpush.msra.mxu0 0.0
    %459 = vmatpush.msra.mxu0 0.0
    %460 = vmatpush.msra.mxu0 0.0
    %461 = vmatpush.msra.mxu0 0.0
    %462 = vmatpush.msra.mxu0 0.0
    %463 = vmatpush.msra.mxu0 0.0
    %464 = vmatpush.msra.mxu0 %v436
    %465 = vmatpush.msra.mxu0 %v434
    %466 = vmatpush.msra.mxu0 %v432
    %467 = vmatpush.msra.mxu0 %v430
    %468 = vmatmul.f32.gmra.mxu0 %v448
    %v469 = vpop.f32.mrf.mxu0
    %v470 = vadd.f32 %v441, %v469
    %471 = vmatmul.f32.gmra.mxu0 %v450
    %v472 = vpop.f32.mrf.mxu0
    %v473 = vadd.f32 %v446, %v472
    %474 = vdwg.mxu0
    %475 = vmatpush.msra.mxu0 0.0
    %476 = vmatpush.msra.mxu0 0.0
    %477 = vmatpush.msra.mxu0 0.0
    %478 = vmatpush.msra.mxu0 0.0
    %479 = vmatpush.msra.mxu0 0.0
    %480 = vmatpush.msra.mxu0 0.0
    %481 = vmatpush.msra.mxu0 0.0
    %482 = vmatpush.msra.mxu0 0.0
    %483 = vmatpush.msra.mxu0 0.0
    %484 = vmatpush.msra.mxu0 0.0
    %485 = vmatpush.msra.mxu0 0.0
    %486 = vmatpush.msra.mxu0 0.0
    %487 = vmatpush.msra.mxu0 %v437
    %488 = vmatpush.msra.mxu0 %v435
    %489 = vmatpush.msra.mxu0 %v433
    %490 = vmatpush.msra.mxu0 %v431
    %491 = vmatmul.f32.gmra.mxu0 %v448
    %v492 = vpop.f32.mrf.mxu0
    %v493 = vadd.f32 %v441, %v492
    %494 = vmatmul.f32.gmra.mxu0 %v450
    %v495 = vpop.f32.mrf.mxu0
    %v496 = vadd.f32 %v446, %v495
    %497 = vdwg.mxu0
    %498 = vst [vmem:[#allocation2] sm:$0xff] %v470
    %499 = vst [vmem:[#allocation2 + $0x8] sm:$0xff] %v493
    %500 = vst [vmem:[#allocation2 + $0x10] sm:$0xff] %v473
    %501 = vst [vmem:[#allocation2 + $0x18] sm:$0xff] %v496
    // Predicated region
    $region10: #{_branch_net_forward_impl.1} parent=1 // pred_check
      _
    $region11: #{_branch_net_forward_impl.1} parent=1 // pred_check_branch
      %503 = sbr.rel (0) target = $region13
    $region12: #{_branch_net_forward_impl.1} parent=1 // pred_region
      %505 = vsyncadd [#allocation3], 0
      %s506 = sshll.u32 [#allocation2], 4
      %s507 = int_to_ptr.vmem [resolvable:$true] %s506
      %s508 = sshll.u32 %s2, 4
      %s509 = int_to_ptr.hbm [resolvable:$true] %s508
      %514 = dma.vmem_to_hbm [thread:$0]  %s507, 512, %s509, [#allocation3], 256, 256, 16
    $region13: #{_branch_net_forward_impl.1} parent=1 // pred_fallthru
      _
    // Predicated region
    $region14: #{_branch_net_forward_impl.1} parent=1 // pred_check
      _
    $region15: #{_branch_net_forward_impl.1} parent=1 // pred_check_branch
      %516 = sbr.rel (0) target = $region17
    $region16: #{_branch_net_forward_impl.1} parent=1 // pred_region
      %518 = dma.done [#allocation3], 512
    $region17: #{_branch_net_forward_impl.1} parent=1 // pred_fallthru
      _
    %519 = vsyncpa [#allocation3], 1

</llo_original>
